<compile_context>
chip_gen: v6e
topology: v6e:2x2x1
jax: 0.10.0
libtpu: 0.0.40
codegen_flags: <defaults>
</compile_context>

<pallas_src>
import functools

import jax
import jax.numpy as jnp
from jax.experimental import pallas as pl
from jax.experimental.pallas import tpu as pltpu

_EPS_NORM = 1e-12   # eps used by F.normalize
_CLAMP_LO = 1e-10
_CLAMP_HI = 15.0

_MAX_TM = 512       # batch tile cap (sublane axis)
_MAX_TN = 1024      # class tile cap (lane axis)
_MIN_TN = 128
_FALLBACK_VMEM = 64 * 1024 * 1024   # conservative (v7x per-TC) if capacity query fails


def _round_up(v, m):
    return (v + m - 1) // m * m


def _cdiv(a, b):
    return (a + b - 1) // b


def _vmem_budget_bytes():
    cap = _FALLBACK_VMEM
    try:
        info_fn = getattr(pltpu, "get_tpu_info", None)
        if info_fn is not None:
            cap = int(getattr(info_fn(), "vmem_capacity_bytes", cap) or cap)
    except Exception:
        pass
    # Leave headroom for compiler-internal scratch / semaphores / DMA descriptors.
    return min(int(cap * 0.6), 96 * 1024 * 1024)


def _mode_tile_bytes(tm, tn, d, in_bytes, out_bytes):
    x = 2 * tm * d * in_bytes                 # double-buffered input tile
    w = 2 * d * tn * in_bytes                 # double-buffered weight tile
    out = 2 * tm * tn * out_bytes             # double-buffered output tile
    # (tm, 1) blocks pad lanes to 128: labels/||w_yi||/||x||^2 (x2 bufs) + 3 scratch.
    small = (3 * 2 + 3) * tm * 128 * 4
    return x + w + out + small


def _pick_tn(num_classes, d, in_bytes, budget):
    tn = min(_round_up(num_classes + 1, _MIN_TN), _MAX_TN)
    # Keep the double-buffered weight stream within ~40% of the VMEM budget.
    while tn > _MIN_TN and 2 * d * tn * in_bytes > 0.4 * budget:
        tn -= _MIN_TN
    return tn


def _pick_tm(batch, tn, d, in_bytes, out_bytes, budget):
    tm = min(_round_up(batch, 8), _MAX_TM)
    # v7x has 2 TensorCores: make the "parallel" batch axis have >= 2 tiles once the
    # batch is big enough that splitting it is cheap.
    if batch >= 256 and _round_up(batch, tm) // tm < 2:
        tm = _round_up(_cdiv(batch, 2), 8)
    while tm > 8 and _mode_tile_bytes(tm, tn, d, in_bytes, out_bytes) > budget:
        tm = max(8, _round_up(tm // 2, 8))
    return tm


# ---------------------------------------------------------------------------
# One-time per-parameter preprocessing (do at init, not per forward)
# ---------------------------------------------------------------------------
class _PreparedWeight:
    def __init__(self, weight, matmul_dtype=None):
        weight = jnp.asarray(weight)
        self.num_classes, self.in_features = weight.shape
        self.matmul_dtype = jnp.dtype(matmul_dtype) if matmul_dtype is not None \
            else jnp.dtype(weight.dtype)
        self.budget = _vmem_budget_bytes()
        in_bytes = self.matmul_dtype.itemsize
        self.tn = _pick_tn(self.num_classes, self.in_features, in_bytes, self.budget)
        self.c_pad = _round_up(self.num_classes + 1, self.tn)
        # Weight stored transposed (D, c_pad): MXU-native contraction layout; padded
        # classes are zero columns. Full-weight copy happens exactly once, here.
        w_t = jnp.zeros((self.in_features, self.c_pad), self.matmul_dtype)
        w_t = w_t.at[:, :self.num_classes].set(weight.T.astype(self.matmul_dtype))
        self.w_t = w_t
        # Per-class L2 norms (f32); gathered per-row in the forward wrapper.
        self.w_norm = jnp.sqrt(
            jnp.sum(jnp.square(weight.astype(jnp.float32)), axis=1))


def prepare_largest_virtual_weight(weight, *, matmul_dtype=None):
    return _PreparedWeight(weight, matmul_dtype=matmul_dtype)


# ---------------------------------------------------------------------------
# mode=True kernel: tiled WZ + per-row virtual logit from scalar quantities
# ---------------------------------------------------------------------------
def _lv_mode_kernel(x_ref, w_ref, lab_ref, wyin_ref, zsq_ref, out_ref,
                    dot_acc, rmax_acc, ridx_acc,
                    *, scale, select, num_classes, virt_col):
    ci = pl.program_id(1)
    nc = pl.num_programs(1)

    need_dot = select != 1            # needs x . w_yi
    need_amax = select in (4, 5, 6)   # needs argmax over classes

    x = x_ref[...]                    # (tm, D)  matmul dtype
    w = w_ref[...]                    # (D, tn)  matmul dtype
    tn = w.shape[1]

    # Single MXU matmul per tile; K sits on the rhs sublane axis (no relayout).
    wz = jnp.dot(x, w, preferred_element_type=jnp.float32)        # (tm, tn) f32

    lab = lab_ref[...]                                             # (tm, 1) int32
    class_ids = jax.lax.broadcasted_iota(jnp.int32, (1, tn), 1) + ci * tn

    @pl.when(ci == 0)
    def _init():
        if need_dot:
            dot_acc[...] = jnp.zeros_like(dot_acc)
        if need_amax:
            rmax_acc[...] = jnp.full_like(rmax_acc, -jnp.inf)
            ridx_acc[...] = jnp.full_like(ridx_acc, num_classes)

    # x . w_yi = WZ[b, label[b]]  (label column lands in exactly one C tile).
    if need_dot:
        is_label = class_ids == lab                                # (tm, tn)
        dot_acc[...] = dot_acc[...] + jnp.sum(
            jnp.where(is_label, wz, 0.0), axis=1, keepdims=True)

    # Running first-occurrence argmax carried across C tiles.
    if need_amax:
        valid = class_ids < num_classes                            # (1, tn)
        wz_m = jnp.where(valid, wz, -jnp.inf)
        tile_max = jnp.max(wz_m, axis=1, keepdims=True)
        tile_idx = jnp.min(
            jnp.where(wz_m == tile_max, class_ids, num_classes),
            axis=1, keepdims=True)
        better = tile_max > rmax_acc[...]          # strict '>' keeps first max
        ridx_acc[...] = jnp.where(better, tile_idx, ridx_acc[...])
        rmax_acc[...] = jnp.where(better, tile_max, rmax_acc[...])

    # Store the plain logits for every tile; the virtual column is patched below.
    out_ref[...] = wz.astype(out_ref.dtype)

    @pl.when(ci == nc - 1)
    def _finalize():
        z_sq = zsq_ref[...]                        # (tm, 1) f32 (wrapper precompute)
        z_nrm = jnp.sqrt(z_sq)
        zs = jnp.maximum(z_nrm, _EPS_NORM)
        w_nrm = wyin_ref[...]                      # (tm, 1) f32 (wrapper gather)
        ws = jnp.maximum(w_nrm, _EPS_NORM)
        if need_dot:
            dot = dot_acc[...]

        if select == 1:
            selected = jnp.clip(w_nrm * z_nrm, _CLAMP_LO, _CLAMP_HI)
        elif select in (2, 3, 4, 5, 6):
            # h = z_unit - w_unit reduced to per-row scalars:
            #   h.x     = z_sq/zs - dot/ws
            #   ||h||^2 = (z_nrm/zs)^2 + (w_nrm/ws)^2 - 2*dot/(zs*ws)
            zu_x = z_sq / zs
            wu_x = dot / ws
            zu_sq = (z_nrm / zs) * (z_nrm / zs)
            wu_sq = (w_nrm / ws) * (w_nrm / ws)
            zw = dot / (zs * ws)
            h_sq = jnp.maximum(zu_sq + wu_sq - 2.0 * zw, 0.0)
            h_nrm = jnp.maximum(jnp.sqrt(h_sq), _EPS_NORM)
            s_zi = jnp.clip(scale * w_nrm * (zu_x - wu_x) / h_nrm,
                            _CLAMP_LO, _CLAMP_HI)
            s_zi_2 = s_zi * 2.0
            if select == 2:
                selected = s_zi
            elif select == 3:
                selected = s_zi_2
            else:
                v_zi = jnp.clip(w_nrm * z_nrm, _CLAMP_LO, _CLAMP_HI)
                hit = ridx_acc[...] == lab
                if select == 4:
                    selected = jnp.where(hit, s_zi, s_zi_2)
                elif select == 5:
                    selected = jnp.where(hit, s_zi, v_zi)
                else:  # select == 6
                    selected = jnp.where(hit, s_zi_2, v_zi)
        elif select == 7:
            selected = 2.0 * dot
        else:  # select == 8
            a = scale
            b = 1.0 - scale
            zu_x = z_sq / zs
            wu_x = dot / ws
            zu_sq = (z_nrm / zs) * (z_nrm / zs)
            wu_sq = (w_nrm / ws) * (w_nrm / ws)
            zw = dot / (zs * ws)
            h8_x = a * zu_x - b * wu_x
            h8_sq = jnp.maximum(a * a * zu_sq + b * b * wu_sq - 2.0 * a * b * zw, 0.0)
            h8_nrm = jnp.maximum(jnp.sqrt(h8_sq), _EPS_NORM)
            selected = w_nrm * h8_x / h8_nrm

        # Virtual-logit column (global class index == num_classes) lives in this last
        # tile at a static lane offset; overwrite just that column.
        out_ref[:, pl.ds(virt_col, 1)] = selected.astype(out_ref.dtype)


# ---------------------------------------------------------------------------
# Wrapper
# ---------------------------------------------------------------------------
def largest_virtual_forward(inputs, labels, mode, weight=None, *,
                            scale=1, select=None, prepared=None):
    """JAX/Pallas equivalent of LargestVirtual.forward.

    inputs: (B, in_features)   labels: (B,) int
    weight: (num_classes, in_features) -- PyTorch Parameter layout; or pass a
    `prepared` object from prepare_largest_virtual_weight (hoists the per-call
    pad/cast/norm passes over the full weight to parameter init).
    """
    inputs = jnp.asarray(inputs)
    B, D = inputs.shape
    out_dtype = inputs.dtype

    if not mode:
        # Plain logits: no fusion opportunity -- let XLA pick tiling (incl. K-tiling).
        if weight is None:
            raise ValueError("mode=False requires `weight`")
        return jnp.matmul(inputs, jnp.asarray(weight).T.astype(inputs.dtype))

    if select not in (1, 2, 3, 4, 5, 6, 7, 8):
        raise Exception(
            'select: {} does not meet any of the required conditions'.format(select))

    if prepared is None:
        prepared = prepare_largest_virtual_weight(weight, matmul_dtype=inputs.dtype)

    C = prepared.num_classes
    assert D == prepared.in_features
    mm_dtype = prepared.matmul_dtype
    tn, c_pad = prepared.tn, prepared.c_pad
    nc = c_pad // tn
    in_bytes = mm_dtype.itemsize
    out_bytes = jnp.dtype(out_dtype).itemsize
    budget = prepared.budget

    tm = _pick_tm(B, tn, D, in_bytes, out_bytes, budget)
    b_pad = _round_up(B, tm)
    nb = b_pad // tm

    # The virtual column (global index C) must live in the last class tile.
    virt_col = C - (nc - 1) * tn
    assert 0 <= virt_col < tn, "virtual-logit column not in the last class tile"

    labels = jnp.asarray(labels).astype(jnp.int32)
    x = inputs.astype(mm_dtype)
    # Per-row scalars precomputed once (cheap XLA ops, off the kernel's serial path).
    z_sq = jnp.sum(jnp.square(inputs.astype(jnp.float32)), axis=1, keepdims=True)
    w_yi_norm = jnp.take(prepared.w_norm, labels, axis=0).reshape(B, 1)

    def pad_rows(a):
        p = b_pad - a.shape[0]
        return a if p == 0 else jnp.pad(a, ((0, p), (0, 0)))

    x_p = pad_rows(x)
    lab_p = pad_rows(labels.reshape(B, 1))
    wyin_p = pad_rows(w_yi_norm)
    zsq_p = pad_rows(z_sq)

    kernel = functools.partial(
        _lv_mode_kernel, scale=float(scale), select=int(select),
        num_classes=int(C), virt_col=int(virt_col))

    out = pl.pallas_call(
        kernel,
        out_shape=jax.ShapeDtypeStruct((b_pad, c_pad), out_dtype),
        grid_spec=pltpu.PrefetchScalarGridSpec(
            num_scalar_prefetch=0,
            grid=(nb, nc),
            in_specs=[
                pl.BlockSpec((tm, D), lambda bi, ci: (bi, 0)),    # inputs
                pl.BlockSpec((D, tn), lambda bi, ci: (0, ci)),    # weight^T (prepared)
                pl.BlockSpec((tm, 1), lambda bi, ci: (bi, 0)),    # labels
                pl.BlockSpec((tm, 1), lambda bi, ci: (bi, 0)),    # ||w_yi||
                pl.BlockSpec((tm, 1), lambda bi, ci: (bi, 0)),    # ||x||^2
            ],
            out_specs=pl.BlockSpec((tm, tn), lambda bi, ci: (bi, ci)),
            scratch_shapes=[
                pltpu.VMEM((tm, 1), jnp.float32),   # x . w_yi accumulator
                pltpu.VMEM((tm, 1), jnp.float32),   # running max (argmax)
                pltpu.VMEM((tm, 1), jnp.int32),     # running argmax index
            ]),
        compiler_params=pltpu.CompilerParams(
            dimension_semantics=("parallel", "arbitrary"),
            vmem_limit_bytes=int(budget)),
    )(x_p, prepared.w_t, lab_p, wyin_p, zsq_p)

    return out[:B, :C + 1]


# ---------------------------------------------------------------------------
# Pure-jnp reference (mirrors the PyTorch module)
# ---------------------------------------------------------------------------
def _reference_forward(inputs, labels, mode, weight, scale=1, select=None):
    wT = weight.T                                   # (D, C)
    wz = inputs @ wT                                # (B, C)
    if not mode:
        return wz
    w_yi = wT[:, labels]                            # (D, B)
    w_yi_norm = jnp.linalg.norm(w_yi, axis=0)       # (B,)
    z_norm = jnp.linalg.norm(inputs, axis=1)        # (B,)
    v_zi = jnp.clip(w_yi_norm * z_norm, _CLAMP_LO, _CLAMP_HI)[:, None]
    z_unit = inputs / jnp.maximum(z_norm, _EPS_NORM)[:, None]
    w_unit = w_yi.T / jnp.maximum(w_yi_norm, _EPS_NORM)[:, None]
    h = z_unit - w_unit
    h_unit = h / jnp.maximum(jnp.linalg.norm(h, axis=1), _EPS_NORM)[:, None]
    s = w_yi_norm[:, None] * h_unit * scale
    s_zi = jnp.clip(jnp.sum(s * inputs, axis=1), _CLAMP_LO, _CLAMP_HI)[:, None]
    s_zi_2 = s_zi * 2
    max_idx = jnp.argmax(wz, axis=1)[:, None]
    lab = labels[:, None]
    if select == 1:
        selected = v_zi
    elif select == 2:
        selected = s_zi
    elif select == 3:
        selected = s_zi_2
    elif select == 4:
        selected = jnp.where(max_idx == lab, s_zi, s_zi_2)
    elif select == 5:
        selected = jnp.where(max_idx == lab, s_zi, v_zi)
    elif select == 6:
        selected = jnp.where(max_idx == lab, s_zi_2, v_zi)
    elif select == 7:
        selected = jnp.sum((w_yi.T * 2) * inputs, axis=1)[:, None]
    elif select == 8:
        h8 = scale * z_unit - (1 - scale) * w_unit
        h8 = w_yi_norm[:, None] * (
            h8 / jnp.maximum(jnp.linalg.norm(h8, axis=1), _EPS_NORM)[:, None])
        selected = jnp.sum(h8 * inputs, axis=1)[:, None]
    return jnp.concatenate([wz, selected], axis=1)


if __name__ == "__main__":
    key = jax.random.PRNGKey(0)
    k = jax.random.split(key, 9)

    def _make(B, D, C, kx, kw, kl):
        inputs = jax.random.normal(kx, (B, D), dtype=jnp.float32)
        limit = (6.0 / (C + D)) ** 0.5                      # xavier_uniform-like
        weight = jax.random.uniform(kw, (C, D), dtype=jnp.float32,
                                    minval=-limit, maxval=limit)
        labels = jax.random.randint(kl, (B,), 0, C, dtype=jnp.int32)
        return inputs, weight, labels

    ok = True

    # --- small single-tile problem: B=8, in_features=32, num_classes=16 ---
    x1, w1, l1 = _make(8, 32, 16, k[0], k[1], k[2])
    out = largest_virtual_forward(x1, l1, False, w1)
    jax.block_until_ready(out)
    ok &= bool(jnp.allclose(out, _reference_forward(x1, l1, False, w1),
                            rtol=1e-5, atol=1e-5))

    prep1 = prepare_largest_virtual_weight(w1)   # hoisted once (== parameter init)
    for select in range(1, 9):
        out = largest_virtual_forward(x1, l1, True, w1, scale=1, select=select,
                                      prepared=prep1)
        jax.block_until_ready(out)
        ref = _reference_forward(x1, l1, True, w1, scale=1, select=select)
        ok &= bool(jnp.allclose(out, ref, rtol=1e-5, atol=1e-5))
        assert out.shape == (8, 17)

    # --- multi-C-tile problem (cross-tile dot / argmax carry): B=24, C=700 ---
    x2, w2, l2 = _make(24, 32, 700, k[3], k[4], k[5])
    prep2 = prepare_largest_virtual_weight(w2)
    for select, scale in ((2, 1), (5, 1), (7, 1), (8, 0.5)):
        out = largest_virtual_forward(x2, l2, True, w2, scale=scale, select=select,
                                      prepared=prep2)
        jax.block_until_ready(out)
        ref = _reference_forward(x2, l2, True, w2, scale=scale, select=select)
        ok &= bool(jnp.allclose(out, ref, rtol=1e-5, atol=1e-5))
        assert out.shape == (24, 701)

    # --- multi-batch-tile problem (megacore split path): B=272, C=300 ---
    x3, w3, l3 = _make(272, 32, 300, k[6], k[7], k[8])
    prep3 = prepare_largest_virtual_weight(w3)
    out = largest_virtual_forward(x3, l3, True, w3, scale=1, select=2, prepared=prep3)
    jax.block_until_ready(out)
    ref = _reference_forward(x3, l3, True, w3, scale=1, select=2)
    ok &= bool(jnp.allclose(out, ref, rtol=1e-5, atol=1e-5))
    assert out.shape == (272, 301)

    assert ok, "Pallas kernel output mismatch vs reference"
    print("KERNEL_OK")
</pallas_src>

<mosaic_0001>
module attributes {stable_mosaic.version = 11 : i64} {
  func.func @_lv_mode_kernel(%arg0: i32, %arg1: i32, %arg2: memref<8x32xf32, #tpu.memory_space<vmem>>, %arg3: memref<32x128xf32, #tpu.memory_space<vmem>>, %arg4: memref<8x1xi32, #tpu.memory_space<vmem>>, %arg5: memref<8x1xf32, #tpu.memory_space<vmem>>, %arg6: memref<8x1xf32, #tpu.memory_space<vmem>>, %arg7: memref<8x128xf32, #tpu.memory_space<vmem>>, %arg8: memref<8x1xf32, #tpu.memory_space<vmem>>, %arg9: memref<8x1xf32, #tpu.memory_space<vmem>>, %arg10: memref<8x1xi32, #tpu.memory_space<vmem>>) attributes {dimension_semantics = [#tpu.dimension_semantics<parallel>, #tpu.dimension_semantics<arbitrary>], iteration_bounds = array<i64: 1, 1>, scalar_prefetch = 0 : i64, scratch_operands = 3 : i64, tpu.core_type = #tpu.core_type<tc>, window_params = [{transform_indices = @transform_0, window_bounds = array<i64: 8, 32>}, {transform_indices = @transform_1, window_bounds = array<i64: 32, 128>}, {transform_indices = @transform_2, window_bounds = array<i64: 8, 1>}, {transform_indices = @transform_3, window_bounds = array<i64: 8, 1>}, {transform_indices = @transform_4, window_bounds = array<i64: 8, 1>}, {transform_indices = @transform_5, window_bounds = array<i64: 8, 128>}]} {
    %c0 = arith.constant 0 : index
    %c0_0 = arith.constant 0 : index
    %0 = vector.load %arg2[%c0, %c0_0] : memref<8x32xf32, #tpu.memory_space<vmem>>, vector<8x32xf32>
    %c0_1 = arith.constant 0 : index
    %c0_2 = arith.constant 0 : index
    %1 = vector.load %arg3[%c0_1, %c0_2] : memref<32x128xf32, #tpu.memory_space<vmem>>, vector<32x128xf32>
    %cst = arith.constant dense<0.000000e+00> : vector<8x128xf32>
    %2 = tpu.matmul %0, %1, %cst {dimension_numbers = #tpu.dot_dimension_numbers<[1], [0], [0], [1], [0, 0, 1, 1], [], []>} : vector<8x32xf32>, vector<32x128xf32>, vector<8x128xf32> -> vector<8x128xf32>
    %c0_3 = arith.constant 0 : index
    %c0_4 = arith.constant 0 : index
    %3 = vector.load %arg7[%c0_3, %c0_4] : memref<8x128xf32, #tpu.memory_space<vmem>>, vector<8x128xf32>
    tpu.vector_store %arg7[%c0_3, %c0_4], %2 {strides = array<i32>} : memref<8x128xf32, #tpu.memory_space<vmem>>, vector<8x128xf32>,
    %c0_i32 = arith.constant 0 : i32
    %4 = arith.cmpi eq, %arg1, %c0_i32 : i32
    %5 = arith.extui %4 : i1 to i32
    %c0_i32_5 = arith.constant 0 : i32
    %6 = arith.cmpi ne, %5, %c0_i32_5 : i32
    scf.if %6 {
      %c0_6 = arith.constant 0 : index
      %c0_7 = arith.constant 0 : index
      %7 = vector.load %arg6[%c0_6, %c0_7] : memref<8x1xf32, #tpu.memory_space<vmem>>, vector<8x1xf32>
      %8 = math.sqrt %7 : vector<8x1xf32>
      %c0_8 = arith.constant 0 : index
      %c0_9 = arith.constant 0 : index
      %9 = vector.load %arg5[%c0_8, %c0_9] : memref<8x1xf32, #tpu.memory_space<vmem>>, vector<8x1xf32>
      %10 = arith.mulf %9, %8 : vector<8x1xf32>
      %cst_10 = arith.constant 1.000000e-10 : f32
      %cst_11 = arith.constant 1.500000e+01 : f32
      %11 = vector.broadcast %cst_10 : f32 to vector<8x1xf32>
      %12 = arith.maximumf %11, %10 : vector<8x1xf32>
      %13 = vector.broadcast %cst_11 : f32 to vector<8x1xf32>
      %14 = arith.minimumf %13, %12 : vector<8x1xf32>
      %c0_12 = arith.constant 0 : index
      %c16 = arith.constant 16 : index
      %15 = vector.load %arg7[%c0_12, %c16] : memref<8x128xf32, #tpu.memory_space<vmem>>, vector<8x1xf32>
      tpu.vector_store %arg7[%c0_12, %c16], %14 {strides = array<i32>} : memref<8x128xf32, #tpu.memory_space<vmem>>, vector<8x1xf32>,
    } else {
    }
    return
  }
  func.func @transform_0(%arg0: i32, %arg1: i32) -> (i32, i32) {
    %c0_i32 = arith.constant 0 : i32
    %c0_i32_0 = arith.constant 0 : i32
    return %arg0, %c0_i32 : i32, i32
  }
  func.func @transform_1(%arg0: i32, %arg1: i32) -> (i32, i32) {
    %c0_i32 = arith.constant 0 : i32
    %c0_i32_0 = arith.constant 0 : i32
    return %c0_i32, %arg1 : i32, i32
  }
  func.func @transform_2(%arg0: i32, %arg1: i32) -> (i32, i32) {
    %c0_i32 = arith.constant 0 : i32
    %c0_i32_0 = arith.constant 0 : i32
    return %arg0, %c0_i32 : i32, i32
  }
  func.func @transform_3(%arg0: i32, %arg1: i32) -> (i32, i32) {
    %c0_i32 = arith.constant 0 : i32
    %c0_i32_0 = arith.constant 0 : i32
    return %arg0, %c0_i32 : i32, i32
  }
  func.func @transform_4(%arg0: i32, %arg1: i32) -> (i32, i32) {
    %c0_i32 = arith.constant 0 : i32
    %c0_i32_0 = arith.constant 0 : i32
    return %arg0, %c0_i32 : i32, i32
  }
  func.func @transform_5(%arg0: i32, %arg1: i32) -> (i32, i32) {
    %c0_i32 = arith.constant 0 : i32
    return %arg0, %arg1 : i32, i32
  }
}

</mosaic_0001>

<llo_original>
// kernel: tpu_custom_call.1
$region0: #{tpu_custom_call.1}
  #allocation0 [shape = 'u32[]', space=smem, size = 0x4, offset = 0x4, fixed_abs, tag = 'smem constant byte address 0x4 - core index']
  #allocation1 [shape = 'u32[144,128]{1,0:T(1,128)}', space=vmem, size = 0x12000, scoped, tag = 'internal scratch']
  #allocation2 [shape = 'f32[8,1]{1,0:T(8,128)}', space=vmem, size = 0x1000, scoped, tag = 'scratch operand']
  #allocation3 [shape = 'f32[8,1]{1,0:T(8,128)}', space=vmem, size = 0x1000, scoped, tag = 'scratch operand']
  #allocation4 [shape = 's32[8,1]{1,0:T(8,128)}', space=vmem, size = 0x1000, scoped, tag = 'scratch operand']
  %s0 = inlined_call_operand.vmem [shape: f32[8,32], index: 0, kind: input, shape index: {}]
  %s1 = inlined_call_operand.hbm [shape: f32[32,128], index: 1, kind: input, shape index: {}]
  %s2 = inlined_call_operand.vmem [shape: s32[8,1], index: 2, kind: input, shape index: {}]
  %s3 = inlined_call_operand.vmem [shape: f32[8,1], index: 3, kind: input, shape index: {}]
  %s4 = inlined_call_operand.vmem [shape: f32[8,1], index: 4, kind: input, shape index: {}]
  %s5 = inlined_call_operand.hbm [shape: f32[8,128], index: 5, kind: output, shape index: {}]
  %s6 = sld [smem:[#allocation0]]
  $region38: #{tpu_custom_call.1} parent=0
    _
  %s8 = ssub.s32 1, %s6
  %s9 = scalar_select 0, %s8, %s6
  $region1: #{tpu_custom_call.1} parent=0
    #allocation5 [shape = 'u8[16384]{0}', space=vmem, size = 0x4000, scoped, tag = 'input window, operand 1, single buffered']
    #allocation6 [shape = 's32[1]{0}', space=sflag, size = 0x4, scoped, tag = 'scoped memory for tpu_custom_call.1']
    #allocation7 [shape = 's32[1]{0}', space=sflag, size = 0x4, scoped, tag = 'scoped memory for tpu_custom_call.1']
    #allocation8 [shape = 'u8[4096]{0}', space=vmem, size = 0x1000, scoped, tag = 'output window, operand 0, single buffered']
    %10 = vsyncpa [#allocation6], 0
    %11 = vsyncpa [#allocation7], 0
    // Predicated region
    $region2: #{tpu_custom_call.1} parent=1 // pred_check
      _
    $region3: #{tpu_custom_call.1} parent=1 // pred_check_branch
      %13 = sbr.rel (0) target = $region5
    $region4: #{tpu_custom_call.1} parent=1 // pred_region
      _
    $region5: #{tpu_custom_call.1} parent=1 // pred_fallthru
      _
    // Predicated region
    $region6: #{tpu_custom_call.1} parent=1 // pred_check
      _
    $region7: #{tpu_custom_call.1} parent=1 // pred_check_branch
      %15 = sbr.rel (0) target = $region9
    $region8: #{tpu_custom_call.1} parent=1 // pred_region
      %s17 = ssub.s32 512, 512
      %18 = vsyncadd [#allocation6], %s17
      %s19 = sshll.u32 [#allocation5], 4
      %s20 = int_to_ptr.vmem [resolvable:$true] %s19
      %25 = dma.hbm_to_vmem [thread:$0]  %s1, 512, %s20, [#allocation6], 128, 128, 8
    $region9: #{tpu_custom_call.1} parent=1 // pred_fallthru
      _
    // Predicated region
    $region10: #{tpu_custom_call.1} parent=1 // pred_check
      _
    $region11: #{tpu_custom_call.1} parent=1 // pred_check_branch
      %27 = sbr.rel (0) target = $region13
    $region12: #{tpu_custom_call.1} parent=1 // pred_region
      _
    $region13: #{tpu_custom_call.1} parent=1 // pred_fallthru
      _
    // Predicated region
    $region14: #{tpu_custom_call.1} parent=1 // pred_check
      _
    $region15: #{tpu_custom_call.1} parent=1 // pred_check_branch
      %29 = sbr.rel (0) target = $region17
    $region16: #{tpu_custom_call.1} parent=1 // pred_region
      _
    $region17: #{tpu_custom_call.1} parent=1 // pred_fallthru
      _
    // Predicated region
    $region18: #{tpu_custom_call.1} parent=1 // pred_check
      _
    $region19: #{tpu_custom_call.1} parent=1 // pred_check_branch
      %31 = sbr.rel (0) target = $region21
    $region20: #{tpu_custom_call.1} parent=1 // pred_region
      _
    $region21: #{tpu_custom_call.1} parent=1 // pred_fallthru
      _
    // Predicated region
    $region22: #{tpu_custom_call.1} parent=1 // pred_check
      _
    $region23: #{tpu_custom_call.1} parent=1 // pred_check_branch
      %33 = sbr.rel (0) target = $region25
    $region24: #{tpu_custom_call.1} parent=1 // pred_region
      %34 = dma.done [#allocation6], 512
    $region25: #{tpu_custom_call.1} parent=1 // pred_fallthru
      _
    %v35 = vld [vmem:[%s0] sm:$0xff]
    %v36 = vld [vmem:[#allocation5] sm:$0xff]
    %v37 = vld [vmem:[#allocation5 + $0x8] sm:$0xff]
    %v38 = vld [vmem:[#allocation5 + $0x10] sm:$0xff]
    %v39 = vld [vmem:[#allocation5 + $0x18] sm:$0xff]
    %vm40 = vcmask 261120
    %v42 = vsel %vm40, %v35, 0
    %44 = vmatprep.subr.mxu0 0.0
    %45 = vmatpush1.msra.mxu0 0.0
    %46 = vmatprep.subr.mxu0 0.0
    %47 = vmatpush1.msra.mxu0 0.0
    %48 = vmatprep.subr.mxu0 0.0
    %49 = vmatpush1.msra.mxu0 0.0
    %50 = vmatprep.subr.mxu0 0.0
    %51 = vmatpush1.msra.mxu0 0.0
    %52 = vmatprep.subr.mxu0 0.0
    %53 = vmatpush1.msra.mxu0 0.0
    %54 = vmatprep.subr.mxu0 0.0
    %55 = vmatpush1.msra.mxu0 0.0
    %56 = vmatprep.subr.mxu0 0.0
    %57 = vmatpush1.msra.mxu0 0.0
    %58 = vmatprep.subr.mxu0 0.0
    %59 = vmatpush1.msra.mxu0 0.0
    %60 = vmatprep.subr.mxu0 0.0
    %61 = vmatpush1.msra.mxu0 0.0
    %62 = vmatprep.subr.mxu0 0.0
    %63 = vmatpush1.msra.mxu0 0.0
    %64 = vmatprep.subr.mxu0 0.0
    %65 = vmatpush1.msra.mxu0 0.0
    %66 = vmatprep.subr.mxu0 0.0
    %67 = vmatpush1.msra.mxu0 0.0
    %68 = vmatprep.subr.mxu0 0.0
    %69 = vmatpush1.msra.mxu0 %v39
    %70 = vmatprep.subr.mxu0 0.0
    %71 = vmatpush1.msra.mxu0 %v38
    %72 = vmatprep.subr.mxu0 0.0
    %73 = vmatpush1.msra.mxu0 %v37
    %74 = vmatprep.subr.mxu0 0.0
    %75 = vmatpush1.msra.mxu0 %v36
    %76 = vmatprep.subr.mxu0 0.0
    %77 = vmatpush2.msra.mxu0 0.0
    %78 = vmatprep.subr.mxu0 0.0
    %79 = vmatpush2.msra.mxu0 0.0
    %80 = vmatprep.subr.mxu0 0.0
    %81 = vmatpush2.msra.mxu0 0.0
    %82 = vmatprep.subr.mxu0 0.0
    %83 = vmatpush2.msra.mxu0 0.0
    %84 = vmatprep.subr.mxu0 0.0
    %85 = vmatpush2.msra.mxu0 0.0
    %86 = vmatprep.subr.mxu0 0.0
    %87 = vmatpush2.msra.mxu0 0.0
    %88 = vmatprep.subr.mxu0 0.0
    %89 = vmatpush2.msra.mxu0 0.0
    %90 = vmatprep.subr.mxu0 0.0
    %91 = vmatpush2.msra.mxu0 0.0
    %92 = vmatprep.subr.mxu0 0.0
    %93 = vmatpush2.msra.mxu0 0.0
    %94 = vmatprep.subr.mxu0 0.0
    %95 = vmatpush2.msra.mxu0 0.0
    %96 = vmatprep.subr.mxu0 0.0
    %97 = vmatpush2.msra.mxu0 0.0
    %98 = vmatprep.subr.mxu0 0.0
    %99 = vmatpush2.msra.mxu0 0.0
    %100 = vmatprep.subr.mxu0 0.0
    %101 = vmatpush2.msra.mxu0 0.0
    %102 = vmatprep.subr.mxu0 0.0
    %103 = vmatpush2.msra.mxu0 0.0
    %104 = vmatprep.subr.mxu0 0.0
    %105 = vmatpush2.msra.mxu0 0.0
    %106 = vmatprep.subr.mxu0 0.0
    %107 = vmatpush2.msra.mxu0 0.0
    %108 = vmatprep.mubr.f32.mxu0 0.0
    %109 = vmatmul.mubr.f32.gmra.mxu0 %v42
    %v110 = vpop.f32.mrf.mxu0
    %v111 = vadd.f32 0.0, %v110
    %v112 = vpop.f32.mrf.mxu0
    %113 = vdwg.mxu0
    %114 = vst [vmem:[#allocation8] sm:$0xff] %v111
    %p115 = scmp.eq.s32.totalorder 0, 0
    // Predicated region
    $region26: #{tpu_custom_call.1} parent=1 // pred_check
      %p116 = pneg %p115
    $region27: #{tpu_custom_call.1} parent=1 // pred_check_branch
      %118 = sbr.rel (%p116) target = $region29
    $region28: #{tpu_custom_call.1} parent=1 // pred_region
      %v119 = vld [vmem:[%s4] sm:$0xff]
      %v120 = vrsqrt.pop %v119
      %v121 = vmul.f32 %v119, %v120
      %vm122 = vcmp.eq.f32.partialorder %v119, inf
      %v123 = vsel %vm122, %v119, %v121
      %vm124 = vcmp.eq.f32.partialorder %v119, 0.0
      %v125 = vand.u32 %v119, 2147483648
      %v126 = vsel %vm124, %v125, %v123
      %v127 = vld [vmem:[%s3] sm:$0xff]
      %v128 = vmul.f32 %v127, %v126
      %v129 = vmax.f32 %v128, 1e-10
      %v130 = vmin.f32 %v129, 15.0
      %132 = vrot.lane.b32.xlu0 %v130, 16
      %v133 = vpop.permute.xlu0 %132
      %vm135 = vcmask 138368
      %136 = vst.msk [vmem:[#allocation8] sm:$0xff] %vm135, %v133
    $region29: #{tpu_custom_call.1} parent=1 // pred_fallthru
      _
    // Predicated region
    $region30: #{tpu_custom_call.1} parent=1 // pred_check
      _
    $region31: #{tpu_custom_call.1} parent=1 // pred_check_branch
      %138 = sbr.rel (0) target = $region33
    $region32: #{tpu_custom_call.1} parent=1 // pred_region
      %s140 = ssub.s32 128, 128
      %141 = vsyncadd [#allocation7], %s140
      %s143 = sshll.u32 [#allocation8], 4
      %s144 = int_to_ptr.vmem [resolvable:$true] %s143
      %146 = dma.vmem_to_hbm [thread:$0]  %s144, 128, %s5, [#allocation7]
    $region33: #{tpu_custom_call.1} parent=1 // pred_fallthru
      _
    // Predicated region
    $region34: #{tpu_custom_call.1} parent=1 // pred_check
      _
    $region35: #{tpu_custom_call.1} parent=1 // pred_check_branch
      %148 = sbr.rel (0) target = $region37
    $region36: #{tpu_custom_call.1} parent=1 // pred_region
      %149 = dma.done [#allocation7], 128
    $region37: #{tpu_custom_call.1} parent=1 // pred_fallthru
      _
    %150 = vsyncpa [#allocation6], 1
    %151 = vsyncpa [#allocation7], 1

</llo_original>
